<compile_context>
chip_gen: v7x
topology: tpu7x:2x2x1
jax: 0.10.0
libtpu: 0.0.40
codegen_flags: <defaults>
</compile_context>

<pallas_src>
import functools

import jax
import jax.numpy as jnp
from jax.experimental import pallas as pl
from jax.experimental.pallas import tpu as pltpu

ORDER = 3                              # module default
N_PAIRS = ORDER * (ORDER + 1) // 2     # number of "order" 1x1 convs (= 6)


def highdiv_kernel(x_ref, wo_ref, wb_ref, o_ref, *, ic_pad, mxu_dtype):
    # x_ref  : (1, C, ts)          tile: channels (sublanes) x spatial (lanes)
    # wo_ref : (npairs*ic_pad, C)  row-stacked "order" conv weights (mxu dtype)
    # wb_ref : (order, C, ic_pad)  "convb" conv weights (mxu dtype)
    order = wb_ref.shape[0]

    xv = x_ref[0]                                             # (C, ts), io dtype
    x_mx = xv.astype(mxu_dtype)

    # One MXU push for all order*(order+1)/2 "order" convs, f32 accumulation.
    yo = jnp.dot(wo_ref[...], x_mx,
                 preferred_element_type=jnp.float32)          # (npairs*ic_pad, ts)

    # Per-j: product of j+1 factors, ReLU, tiny (C x ic_pad) "convb" dot,
    # sigmoid expressed through tanh (one EUP op), accumulated.
    t_sum = None
    cnt = 0
    for j in range(order):
        p = yo[cnt * ic_pad:(cnt + 1) * ic_pad, :]            # aligned slice (view)
        cnt += 1
        for _ in range(j):
            p = p * yo[cnt * ic_pad:(cnt + 1) * ic_pad, :]
            cnt += 1
        p = jnp.maximum(p, 0.0)                               # F.relu, f32
        z = jnp.dot(wb_ref[j], p.astype(mxu_dtype),
                    preferred_element_type=jnp.float32)       # (C, ts) f32
        t = jnp.tanh(0.5 * z)                                 # sigmoid via tanh
        t_sum = t if t_sum is None else t_sum + t

    # sum_j sigmoid(z_j) / order == 0.5 + (0.5/order) * sum_j tanh(z_j / 2)
    out = xv.astype(jnp.float32) * (0.5 + (0.5 / order) * t_sum)
    o_ref[0] = out.astype(o_ref.dtype)


def _pick_spatial_tile(S, cap):
    """Prefer a 128-multiple tile that divides S exactly (no ragged block)."""
    cap = max(128, min(cap, pl.cdiv(S, 128) * 128))
    if S % 128 == 0:
        t = min(cap, S)
        for _ in range(64):                      # bounded divisor search
            if t >= 128 and S % t == 0:
                return t
            t -= 128
    return cap                                   # ragged tail: Pallas masks edge store


def highdiv_forward(x_nchw, wo_packed, wb_packed, *, ts=None,
                    io_dtype=jnp.bfloat16, mxu_dtype=jnp.bfloat16):
    """HighDivModule forward.

    x_nchw   : (N, C, H, W)
    wo_packed: (N_PAIRS*IC_pad, C)   from pack_weights
    wb_packed: (ORDER, C, IC_pad)    from pack_weights
    io_dtype : HBM-streaming dtype for x / out tiles (None -> keep x.dtype)
    mxu_dtype: matmul operand dtype (accumulation is always f32)
    """
    N, C, H, W = x_nchw.shape
    S = H * W
    orig_dtype = x_nchw.dtype
    order, _, ic_pad = wb_packed.shape
    npairs = order * (order + 1) // 2
    assert wo_packed.shape == (npairs * ic_pad, C)

    if io_dtype is not None and x_nchw.dtype != io_dtype:
        x_nchw = x_nchw.astype(io_dtype)
    if wo_packed.dtype != mxu_dtype:
        wo_packed = wo_packed.astype(mxu_dtype)
    if wb_packed.dtype != mxu_dtype:
        wb_packed = wb_packed.astype(mxu_dtype)

    io_itemsize = jnp.dtype(x_nchw.dtype).itemsize

    # Per-lane VMEM footprint: double-buffered in+out tiles plus f32
    # intermediates (yo, per-j products, z/tanh accumulators, f32 out).
    bytes_per_lane = (4 * C * io_itemsize
                      + 4 * (npairs * ic_pad + 3 * ic_pad + 3 * C))
    try:
        vmem_phys = int(pltpu.get_tpu_info().vmem_capacity_bytes)
    except Exception:
        vmem_phys = 64 * 1024 * 1024             # v7x-conservative fallback
    vmem_limit = int(min(vmem_phys * 3 // 4, 64 * 1024 * 1024))
    budget = vmem_limit - 8 * 1024 * 1024        # headroom: weights + compiler scratch

    if ts is None:
        cap = max(128, (budget // bytes_per_lane) // 128 * 128)
        if N == 1:
            # v7x megacore: make sure both TCs get at least one grid step.
            cap = min(cap, max(128, (pl.cdiv(S, 2) // 128) * 128))
        ts = _pick_spatial_tile(S, cap)
    assert ts % 128 == 0, "spatial tile must be a multiple of 128 lanes"

    x3 = x_nchw.reshape(N, C, S)
    kernel = functools.partial(highdiv_kernel, ic_pad=ic_pad, mxu_dtype=mxu_dtype)

    out = pl.pallas_call(
        kernel,
        out_shape=jax.ShapeDtypeStruct((N, C, S), x3.dtype),
        grid_spec=pltpu.PrefetchScalarGridSpec(
            num_scalar_prefetch=0,
            grid=(N, pl.cdiv(S, ts)),
            in_specs=[
                pl.BlockSpec((1, C, ts), lambda n, s: (n, 0, s)),
                pl.BlockSpec(wo_packed.shape, lambda n, s: (0, 0)),      # resident
                pl.BlockSpec(wb_packed.shape, lambda n, s: (0, 0, 0)),   # resident
            ],
            out_specs=pl.BlockSpec((1, C, ts), lambda n, s: (n, 0, s)),
        ),
        compiler_params=pltpu.CompilerParams(
            dimension_semantics=("parallel", "parallel"),
            vmem_limit_bytes=vmem_limit,
        ),
    )(x3, wo_packed, wb_packed)

    out = out.reshape(N, C, H, W)
    if out.dtype != orig_dtype:
        out = out.astype(orig_dtype)             # preserve module output dtype
    return out


def highdiv_reference(x_nchw, w_order, w_convb):
    """Pure-JAX reference mirroring the PyTorch forward (f32)."""
    N, C, H, W = x_nchw.shape
    x = x_nchw.reshape(N, C, H * W).astype(jnp.float32)
    cnt = 0
    acc = jnp.zeros_like(x)
    order = w_convb.shape[0]
    for j in range(order):
        p = None
        for _ in range(j + 1):
            y = jnp.einsum('oc,ncs->nos', w_order[cnt], x)      # 1x1 conv
            p = y if p is None else p * y
            cnt += 1
        p = jax.nn.relu(p)
        acc = acc + jax.nn.sigmoid(jnp.einsum('co,nos->ncs', w_convb[j], p))
    out = x * acc / order
    return out.reshape(N, C, H, W)


def make_params(in_channels, key):
    """Synthetic weights in the PyTorch conv convention (out, in) per 1x1 conv."""
    inter = in_channels // 8 * 2
    k_o, k_b = jax.random.split(key)
    w_order = (jax.random.normal(k_o, (N_PAIRS, inter, in_channels), jnp.float32)
               / jnp.sqrt(in_channels))
    w_convb = (jax.random.normal(k_b, (ORDER, in_channels, inter), jnp.float32)
               / jnp.sqrt(inter))
    return w_order, w_convb


def pack_weights(w_order, w_convb, *, sublane=8):
    """Pack weights for the fused kernel, padding IC to a sublane multiple.

    w_order (N_PAIRS, IC, C) -> row-stacked   (N_PAIRS*IC_pad, C)  (zero-padded rows)
    w_convb (ORDER, C, IC)   -> zero-padded   (ORDER, C, IC_pad)
    """
    n_pairs, IC, C = w_order.shape
    order = w_convb.shape[0]
    ic_pad = ((IC + sublane - 1) // sublane) * sublane
    wo = jnp.zeros((n_pairs * ic_pad, C), w_order.dtype)
    for k in range(n_pairs):
        wo = wo.at[k * ic_pad:k * ic_pad + IC, :].set(w_order[k])
    wb = jnp.zeros((order, C, ic_pad), w_convb.dtype)
    wb = wb.at[:, :, :IC].set(w_convb)
    return wo, wb


if __name__ == "__main__":
    key = jax.random.PRNGKey(0)
    k_x, k_w = jax.random.split(key)

    N, C, H, W = 2, 16, 16, 16            # in_channels=16 -> inter_channels=4
    x = jax.random.normal(k_x, (N, C, H, W), jnp.float32)
    w_order, w_convb = make_params(C, k_w)
    wo_packed, wb_packed = pack_weights(w_order, w_convb)

    ref = jax.block_until_ready(highdiv_reference(x, w_order, w_convb))

    # Anchor path: f32 I/O + f32 MXU operands -> tight check of kernel logic.
    out_f32 = jax.block_until_ready(
        highdiv_forward(x, wo_packed, wb_packed,
                        io_dtype=None, mxu_dtype=jnp.float32))
    assert out_f32.shape == x.shape and out_f32.dtype == x.dtype
    assert jnp.allclose(out_f32, ref, atol=1e-4, rtol=1e-4), "f32 path mismatch"

    # Default fast path: bf16 HBM streaming + single-pass bf16 MXU, f32
    # elementwise math in-kernel (tolerance reflects bf16 I/O quantization).
    out_fast = jax.block_until_ready(highdiv_forward(x, wo_packed, wb_packed))
    assert out_fast.shape == x.shape and out_fast.dtype == x.dtype
    assert jnp.allclose(out_fast, ref, atol=1e-1, rtol=1e-1), "bf16 path mismatch"

    print("KERNEL_OK")
</pallas_src>

<mosaic_0001>
module attributes {stable_mosaic.version = 11 : i64} {
  func.func @highdiv_kernel(%arg0: i32, %arg1: i32, %arg2: memref<1x16x256xf32, #tpu.memory_space<vmem>>, %arg3: memref<48x16xf32, #tpu.memory_space<vmem>>, %arg4: memref<3x16x8xf32, #tpu.memory_space<vmem>>, %arg5: memref<1x16x256xf32, #tpu.memory_space<vmem>>) attributes {dimension_semantics = [#tpu.dimension_semantics<parallel>, #tpu.dimension_semantics<parallel>], iteration_bounds = array<i64: 2, 1>, scalar_prefetch = 0 : i64, scratch_operands = 0 : i64, tpu.core_type = #tpu.core_type<tc>, window_params = [{transform_indices = @transform_0, window_bounds = array<i64: 1, 16, 256>}, {pipeline_mode = #tpu.pipeline_mode<synchronous>, transform_indices = @transform_1, window_bounds = array<i64: 48, 16>}, {pipeline_mode = #tpu.pipeline_mode<synchronous>, transform_indices = @transform_2, window_bounds = array<i64: 3, 16, 8>}, {transform_indices = @transform_3, window_bounds = array<i64: 1, 16, 256>}]} {
    %c0 = arith.constant 0 : index
    %c0_0 = arith.constant 0 : index
    %c0_1 = arith.constant 0 : index
    %0 = vector.load %arg2[%c0, %c0_0, %c0_1] : memref<1x16x256xf32, #tpu.memory_space<vmem>>, vector<1x16x256xf32>
    %1 = vector.shape_cast %0 : vector<1x16x256xf32> to vector<16x256xf32>
    %c0_2 = arith.constant 0 : index
    %c0_3 = arith.constant 0 : index
    %2 = vector.load %arg3[%c0_2, %c0_3] : memref<48x16xf32, #tpu.memory_space<vmem>>, vector<48x16xf32>
    %cst = arith.constant dense<0.000000e+00> : vector<48x256xf32>
    %3 = tpu.matmul %2, %1, %cst {dimension_numbers = #tpu.dot_dimension_numbers<[1], [0], [0], [1], [0, 0, 1, 1], [], []>} : vector<48x16xf32>, vector<16x256xf32>, vector<48x256xf32> -> vector<48x256xf32>
    %4 = vector.extract_strided_slice %3 {offsets = [0, 0], sizes = [8, 256], strides = [1, 1]} : vector<48x256xf32> to vector<8x256xf32>
    %cst_4 = arith.constant 0.000000e+00 : f32
    %5 = vector.broadcast %cst_4 : f32 to vector<8x256xf32>
    %6 = arith.maximumf %4, %5 : vector<8x256xf32>
    %c0_5 = arith.constant 0 : index
    %c0_6 = arith.constant 0 : index
    %c0_7 = arith.constant 0 : index
    %7 = vector.load %arg4[%c0_5, %c0_6, %c0_7] : memref<3x16x8xf32, #tpu.memory_space<vmem>>, vector<1x16x8xf32>
    %8 = vector.shape_cast %7 : vector<1x16x8xf32> to vector<16x8xf32>
    %cst_8 = arith.constant dense<0.000000e+00> : vector<16x256xf32>
    %9 = tpu.matmul %8, %6, %cst_8 {dimension_numbers = #tpu.dot_dimension_numbers<[1], [0], [0], [1], [0, 0, 1, 1], [], []>} : vector<16x8xf32>, vector<8x256xf32>, vector<16x256xf32> -> vector<16x256xf32>
    %cst_9 = arith.constant 5.000000e-01 : f32
    %10 = vector.broadcast %cst_9 : f32 to vector<16x256xf32>
    %11 = arith.mulf %10, %9 : vector<16x256xf32>
    %12 = math.tanh %11 : vector<16x256xf32>
    %13 = vector.extract_strided_slice %3 {offsets = [8, 0], sizes = [8, 256], strides = [1, 1]} : vector<48x256xf32> to vector<8x256xf32>
    %14 = vector.extract_strided_slice %3 {offsets = [16, 0], sizes = [8, 256], strides = [1, 1]} : vector<48x256xf32> to vector<8x256xf32>
    %15 = arith.mulf %13, %14 : vector<8x256xf32>
    %cst_10 = arith.constant 0.000000e+00 : f32
    %16 = vector.broadcast %cst_10 : f32 to vector<8x256xf32>
    %17 = arith.maximumf %15, %16 : vector<8x256xf32>
    %c1 = arith.constant 1 : index
    %c0_11 = arith.constant 0 : index
    %c0_12 = arith.constant 0 : index
    %18 = vector.load %arg4[%c1, %c0_11, %c0_12] : memref<3x16x8xf32, #tpu.memory_space<vmem>>, vector<1x16x8xf32>
    %19 = vector.shape_cast %18 : vector<1x16x8xf32> to vector<16x8xf32>
    %cst_13 = arith.constant dense<0.000000e+00> : vector<16x256xf32>
    %20 = tpu.matmul %19, %17, %cst_13 {dimension_numbers = #tpu.dot_dimension_numbers<[1], [0], [0], [1], [0, 0, 1, 1], [], []>} : vector<16x8xf32>, vector<8x256xf32>, vector<16x256xf32> -> vector<16x256xf32>
    %cst_14 = arith.constant 5.000000e-01 : f32
    %21 = vector.broadcast %cst_14 : f32 to vector<16x256xf32>
    %22 = arith.mulf %21, %20 : vector<16x256xf32>
    %23 = math.tanh %22 : vector<16x256xf32>
    %24 = arith.addf %12, %23 : vector<16x256xf32>
    %25 = vector.extract_strided_slice %3 {offsets = [24, 0], sizes = [8, 256], strides = [1, 1]} : vector<48x256xf32> to vector<8x256xf32>
    %26 = vector.extract_strided_slice %3 {offsets = [32, 0], sizes = [8, 256], strides = [1, 1]} : vector<48x256xf32> to vector<8x256xf32>
    %27 = arith.mulf %25, %26 : vector<8x256xf32>
    %28 = vector.extract_strided_slice %3 {offsets = [40, 0], sizes = [8, 256], strides = [1, 1]} : vector<48x256xf32> to vector<8x256xf32>
    %29 = arith.mulf %27, %28 : vector<8x256xf32>
    %cst_15 = arith.constant 0.000000e+00 : f32
    %30 = vector.broadcast %cst_15 : f32 to vector<8x256xf32>
    %31 = arith.maximumf %29, %30 : vector<8x256xf32>
    %c2 = arith.constant 2 : index
    %c0_16 = arith.constant 0 : index
    %c0_17 = arith.constant 0 : index
    %32 = vector.load %arg4[%c2, %c0_16, %c0_17] : memref<3x16x8xf32, #tpu.memory_space<vmem>>, vector<1x16x8xf32>
    %33 = vector.shape_cast %32 : vector<1x16x8xf32> to vector<16x8xf32>
    %cst_18 = arith.constant dense<0.000000e+00> : vector<16x256xf32>
    %34 = tpu.matmul %33, %31, %cst_18 {dimension_numbers = #tpu.dot_dimension_numbers<[1], [0], [0], [1], [0, 0, 1, 1], [], []>} : vector<16x8xf32>, vector<8x256xf32>, vector<16x256xf32> -> vector<16x256xf32>
    %cst_19 = arith.constant 5.000000e-01 : f32
    %35 = vector.broadcast %cst_19 : f32 to vector<16x256xf32>
    %36 = arith.mulf %35, %34 : vector<16x256xf32>
    %37 = math.tanh %36 : vector<16x256xf32>
    %38 = arith.addf %24, %37 : vector<16x256xf32>
    %cst_20 = arith.constant 0.166666672 : f32
    %39 = vector.broadcast %cst_20 : f32 to vector<16x256xf32>
    %40 = arith.mulf %39, %38 : vector<16x256xf32>
    %cst_21 = arith.constant 5.000000e-01 : f32
    %41 = vector.broadcast %cst_21 : f32 to vector<16x256xf32>
    %42 = arith.addf %41, %40 : vector<16x256xf32>
    %43 = arith.mulf %1, %42 : vector<16x256xf32>
    %c0_22 = arith.constant 0 : index
    %c0_23 = arith.constant 0 : index
    %c0_24 = arith.constant 0 : index
    %44 = vector.load %arg5[%c0_22, %c0_23, %c0_24] : memref<1x16x256xf32, #tpu.memory_space<vmem>>, vector<1x16x256xf32>
    %45 = vector.shape_cast %44 : vector<1x16x256xf32> to vector<16x256xf32>
    %46 = vector.shape_cast %43 : vector<16x256xf32> to vector<1x16x256xf32>
    tpu.vector_store %arg5[%c0_22, %c0_23, %c0_24], %46 {strides = array<i32>} : memref<1x16x256xf32, #tpu.memory_space<vmem>>, vector<1x16x256xf32>,
    return
  }
  func.func @transform_0(%arg0: i32, %arg1: i32) -> (i32, i32, i32) {
    %c0_i32 = arith.constant 0 : i32
    %c0_i32_0 = arith.constant 0 : i32
    return %arg0, %c0_i32, %arg1 : i32, i32, i32
  }
  func.func @transform_1(%arg0: i32, %arg1: i32) -> (i32, i32) {
    %c0_i32 = arith.constant 0 : i32
    %c0_i32_0 = arith.constant 0 : i32
    %c0_i32_1 = arith.constant 0 : i32
    return %c0_i32, %c0_i32_0 : i32, i32
  }
  func.func @transform_2(%arg0: i32, %arg1: i32) -> (i32, i32, i32) {
    %c0_i32 = arith.constant 0 : i32
    %c0_i32_0 = arith.constant 0 : i32
    %c0_i32_1 = arith.constant 0 : i32
    %c0_i32_2 = arith.constant 0 : i32
    return %c0_i32, %c0_i32_0, %c0_i32_1 : i32, i32, i32
  }
  func.func @transform_3(%arg0: i32, %arg1: i32) -> (i32, i32, i32) {
    %c0_i32 = arith.constant 0 : i32
    %c0_i32_0 = arith.constant 0 : i32
    return %arg0, %c0_i32, %arg1 : i32, i32, i32
  }
}

</mosaic_0001>

<llo_original>
// kernel: tpu_custom_call.1
$region0: #{tpu_custom_call.1}
  #allocation0 [shape = 'u32[]', space=smem, size = 0x4, offset = 0x4, fixed_abs, tag = 'smem constant byte address 0x4 - core index']
  #allocation1 [shape = 'u32[144,128]{1,0:T(1,128)}', space=vmem, size = 0x12000, scoped, tag = 'internal scratch']
  %s0 = inlined_call_operand.vmem [shape: f32[2,16,256], index: 0, kind: input, shape index: {}]
  %s1 = inlined_call_operand.vmem [shape: f32[48,16], index: 1, kind: input, shape index: {}]
  %s2 = inlined_call_operand.vmem [shape: f32[3,16,8], index: 2, kind: input, shape index: {}]
  %s3 = inlined_call_operand.hbm [shape: f32[2,16,256], index: 3, kind: output, shape index: {}]
  %s4 = sld [smem:[#allocation0]]
  $region45: #{tpu_custom_call.1} parent=0
    _
  %s6 = ssub.s32 1, %s4
  %s7 = scalar_select 0, %s6, %s4
  $region1: #{tpu_custom_call.1} parent=0
    #allocation2 [shape = 'u8[32768]{0}', space=vmem, size = 0x8000, scoped, tag = 'output window, operand 0']
    #allocation3 [shape = 's32[2]{0}', space=sflag, size = 0x8, scoped, tag = 'scoped memory for tpu_custom_call.1']
    %8 = vsyncpa [#allocation3], 0
    %s9 = scalar_lea.sflag [#allocation3], 1
    %10 = vsyncpa %s9, 0
    loop: start=0, step=1, limit=4
    $region2: #{tpu_custom_call.1} parent=1 // loop_pre_header
      _
    $region3: #{tpu_custom_call.1} parent=1 // loop_header
      %s12 = sphi 0, %s16
      %p13 = scmp.ge.s32.totalorder %s12, 4
      %s19 = sphi 0, %s31
      %s20 = sphi 0, %s27
      %s21 = sphi 0, %s19
      %s22 = sphi 0, %s20
      %s23 = sphi 0, %s21
      %s24 = sphi 0, %s22
      %s36 = sphi 0, %s38
      %s39 = sphi 0, %s36
      %s40 = sphi 0, %s39
      %s56 = sphi 0, %s40
      %s60 = sphi 0, %s60
      %s62 = sphi 0, %s60
      %s63 = sphi 0, %s62
      %s77 = sphi 0, %s63
      %s81 = sphi 0, %s81
      %s83 = sphi 0, %s81
      %s84 = sphi 0, %s83
      %s98 = sphi 0, %s84
      %s106 = sphi 0, %s108
      %s109 = sphi 0, %s106
      %s110 = sphi 0, %s109
      %s126 = sphi 0, %s110
    $region4: #{tpu_custom_call.1} parent=1 // loop_header_branch
      %15 = sbr.rel (%p13) target = $region8
    $region5: #{tpu_custom_call.1} parent=1 // loop_body
      %s17 = ssub.s32 %s12, 1
      %s18 = ssub.s32 %s12, 2
      %s25 = sadd.s32 1, %s20
      %p26 = scmp.ge.s32.totalorder %s25, 1
      %s27 = scalar_select %p26, 0, %s25
      %s28 = sadd.s32 1, %s19
      %s29 = scalar_select %p26, %s28, %s19
      %p30 = scmp.ge.s32.totalorder %s29, 2
      %s31 = scalar_select %p30, 0, %s29
      %s32 = ssub.s32 %s19, %s31
      %s33 = ssub.s32 %s20, %s27
      %s34 = sor.u32 %s32, %s33
      %p35 = scmp.eq.s32.totalorder %s34, 0
      %s37 = sadd.s32 %s36, 1
      %s38 = scalar_select %p35, %s36, %s37
      %p41 = pneg %p35
      %p42 = scmp.eq.s32.totalorder %s12, 1
      %p43 = por %p41, %p42
      %p44 = scmp.ne.s32.totalorder %s36, %s39
      %p45 = scmp.eq.s32.totalorder %s12, 0
      %p46 = por %p44, %p45
      %p47 = scmp.ne.s32.totalorder %s36, %s39
      %p48 = scmp.eq.s32.totalorder %s17, 1
      %p49 = por %p47, %p48
      %p50 = scmp.ne.s32.totalorder %s39, %s40
      %p51 = scmp.eq.s32.totalorder %s17, 0
      %p52 = por %p50, %p51
      %p53 = scmp.ne.s32.totalorder %s39, %s40
      %p54 = scmp.eq.s32.totalorder %s18, 1
      %p55 = por %p53, %p54
      %p57 = scmp.ne.s32.totalorder %s40, %s56
      %p58 = scmp.eq.s32.totalorder %s18, 0
      %p59 = por %p57, %p58
      %s61 = sadd.s32 %s60, 1
      %p64 = scmp.eq.s32.totalorder %s12, 1
      %p65 = scmp.ne.s32.totalorder %s60, %s62
      %p66 = scmp.eq.s32.totalorder %s12, 0
      %p67 = por %p65, %p66
      %p68 = scmp.ne.s32.totalorder %s60, %s62
      %p69 = scmp.eq.s32.totalorder %s17, 1
      %p70 = por %p68, %p69
      %p71 = scmp.ne.s32.totalorder %s62, %s63
      %p72 = scmp.eq.s32.totalorder %s17, 0
      %p73 = por %p71, %p72
      %p74 = scmp.ne.s32.totalorder %s62, %s63
      %p75 = scmp.eq.s32.totalorder %s18, 1
      %p76 = por %p74, %p75
      %p78 = scmp.ne.s32.totalorder %s63, %s77
      %p79 = scmp.eq.s32.totalorder %s18, 0
      %p80 = por %p78, %p79
      %s82 = sadd.s32 %s81, 1
      %p85 = scmp.eq.s32.totalorder %s12, 1
      %p86 = scmp.ne.s32.totalorder %s81, %s83
      %p87 = scmp.eq.s32.totalorder %s12, 0
      %p88 = por %p86, %p87
      %p89 = scmp.ne.s32.totalorder %s81, %s83
      %p90 = scmp.eq.s32.totalorder %s17, 1
      %p91 = por %p89, %p90
      %p92 = scmp.ne.s32.totalorder %s83, %s84
      %p93 = scmp.eq.s32.totalorder %s17, 0
      %p94 = por %p92, %p93
      %p95 = scmp.ne.s32.totalorder %s83, %s84
      %p96 = scmp.eq.s32.totalorder %s18, 1
      %p97 = por %p95, %p96
      %p99 = scmp.ne.s32.totalorder %s84, %s98
      %p100 = scmp.eq.s32.totalorder %s18, 0
      %p101 = por %p99, %p100
      %s102 = ssub.s32 %s19, %s31
      %s103 = ssub.s32 %s20, %s27
      %s104 = sor.u32 %s102, %s103
      %p105 = scmp.eq.s32.totalorder %s104, 0
      %s107 = sadd.s32 %s106, 1
      %s108 = scalar_select %p105, %s106, %s107
      %p111 = pneg %p105
      %p112 = scmp.eq.s32.totalorder %s12, 1
      %p113 = por %p111, %p112
      %p114 = scmp.ne.s32.totalorder %s106, %s109
      %p115 = scmp.eq.s32.totalorder %s12, 0
      %p116 = por %p114, %p115
      %p117 = scmp.ne.s32.totalorder %s106, %s109
      %p118 = scmp.eq.s32.totalorder %s17, 1
      %p119 = por %p117, %p118
      %p120 = scmp.ne.s32.totalorder %s109, %s110
      %p121 = scmp.eq.s32.totalorder %s17, 0
      %p122 = por %p120, %p121
      %p123 = scmp.ne.s32.totalorder %s109, %s110
      %p124 = scmp.eq.s32.totalorder %s18, 1
      %p125 = por %p123, %p124
      %p127 = scmp.ne.s32.totalorder %s110, %s126
      %p128 = scmp.eq.s32.totalorder %s18, 0
      %p129 = por %p127, %p128
      %p130 = scmp.le.s32.totalorder 1, %s12
      %p131 = scmp.lt.s32.totalorder %s12, 3
      %p132 = pnand %p130, %p131
      %p133 = pneg %p132
      // Predicated region
      $region9: #{tpu_custom_call.1} parent=5 // pred_check
        _
      $region10: #{tpu_custom_call.1} parent=5 // pred_check_branch
        %135 = sbr.rel (%p132) target = $region12
      $region11: #{tpu_custom_call.1} parent=5 // pred_region
        %s136 = ssub.s32 %s12, 1
        // Predicated region
        $region13: #{tpu_custom_call.1} parent=11 // pred_check
          %p137 = pneg %p73
        $region14: #{tpu_custom_call.1} parent=11 // pred_check_branch
          %139 = sbr.rel (%p137) target = $region16
        $region15: #{tpu_custom_call.1} parent=11 // pred_region
          _
        $region16: #{tpu_custom_call.1} parent=11 // pred_fallthru
          _
        // Predicated region
        $region17: #{tpu_custom_call.1} parent=11 // pred_check
          %p140 = pneg %p94
        $region18: #{tpu_custom_call.1} parent=11 // pred_check_branch
          %142 = sbr.rel (%p140) target = $region20
        $region19: #{tpu_custom_call.1} parent=11 // pred_region
          _
        $region20: #{tpu_custom_call.1} parent=11 // pred_fallthru
          _
      $region12: #{tpu_custom_call.1} parent=5 // pred_fallthru
        _
      %p143 = scmp.lt.s32.totalorder %s12, 2
      // Predicated region
      $region21: #{tpu_custom_call.1} parent=5 // pred_check
        %p144 = pneg %p143
      $region22: #{tpu_custom_call.1} parent=5 // pred_check_branch
        %146 = sbr.rel (%p144) target = $region24
      $region23: #{tpu_custom_call.1} parent=5 // pred_region
        // Predicated region
        $region25: #{tpu_custom_call.1} parent=23 // pred_check
          %p147 = pneg %p46
        $region26: #{tpu_custom_call.1} parent=23 // pred_check_branch
          %149 = sbr.rel (%p147) target = $region28
        $region27: #{tpu_custom_call.1} parent=23 // pred_region
          %s150 = smul.u32 2, %s20
          %p151 = scmp.lt.s32.totalorder %s19, 1
          %s152 = scalar_select %p151, %s19, 1
          %p153 = scmp.lt.s32.totalorder %s150, 1
          %s154 = scalar_select %p153, %s150, 1
          %s155 = smul.addr %s152, 4
          %s156 = sadd.s32 %s154, %s155
          %s157 = smul.addr %s156, 8
          %s158 = scalar_lea.vmem %s0, %s157
          %s159 = smul.u32 2, %s20
        $region28: #{tpu_custom_call.1} parent=23 // pred_fallthru
          _
      $region24: #{tpu_custom_call.1} parent=5 // pred_fallthru
        _
      %p160 = scmp.le.s32.totalorder 1, %s12
      %p161 = scmp.lt.s32.totalorder %s12, 3
      %p162 = pnand %p160, %p161
      %p163 = pneg %p162
      // Predicated region
      $region29: #{tpu_custom_call.1} parent=5 // pred_check
        _
      $region30: #{tpu_custom_call.1} parent=5 // pred_check_branch
        %165 = sbr.rel (%p162) target = $region32
      $region31: #{tpu_custom_call.1} parent=5 // pred_region
        %s166 = ssub.s32 %s12, 1
        %s167 = smul.u32 2, %s22
        %p168 = scmp.lt.s32.totalorder %s21, 1
        %s169 = scalar_select %p168, %s21, 1
        %p170 = scmp.lt.s32.totalorder %s167, 1
        %s171 = scalar_select %p170, %s167, 1
        %s172 = smul.addr %s169, 4
        %s173 = sadd.s32 %s171, %s172
        %s174 = smul.addr %s173, 8
        %s175 = scalar_lea.vmem %s0, %s174
        %p176 = pneg %p52
        %p177 = pneg %p49
        %p178 = pneg %p73
        %p179 = pneg %p70
        %p180 = pneg %p94
        %p181 = pneg %p91
        %p182 = pneg %p122
        %p183 = pneg %p119
        %s184 = sand.u32 %s109, 1
        %s185 = scalar_lea.sflag [#allocation3], %s184
        %s186 = sand.u32 %s109, 1
        %s187 = smul.addr %s186, 32
        %s188 = scalar_lea.vmem [#allocation2], %s187
        %s189 = smul.u32 2, %s22
        %p190 = scmp.lt.s32.totalorder %s21, 1
        %s191 = scalar_select %p190, %s21, 1
        %p192 = scmp.lt.s32.totalorder %s189, 1
        %s193 = scalar_select %p192, %s189, 1
        %s194 = smul.addr %s191, 4
        %s195 = sadd.s32 %s193, %s194
        %s196 = smul.addr %s195, 8
        %s197 = scalar_lea.vmem %s0, %s196
        %s198 = smul.u32 2, %s22
        %s199 = smul.u32 2, %s22
        %v200 = vld [vmem:[%s197] sm:$0xff]
        %v201 = vld [vmem:[%s197 + $0x8] sm:$0xff]
        %v202 = vld [vmem:[%s197 + $0x10] sm:$0xff]
        %v203 = vld [vmem:[%s197 + $0x18] sm:$0xff]
        %v204 = vld [vmem:[%s1] sm:$0xff]
        %v205 = vld [vmem:[%s1 + $0x8] sm:$0xff]
        %v206 = vld [vmem:[%s1 + $0x10] sm:$0xff]
        %v207 = vld [vmem:[%s1 + $0x18] sm:$0xff]
        %v208 = vld [vmem:[%s1 + $0x20] sm:$0xff]
        %v209 = vld [vmem:[%s1 + $0x28] sm:$0xff]
        %vm210 = vcmask 130048
        %v212 = vsel %vm210, %v204, 0
        %v215 = vsel %vm210, %v205, 0
        %v218 = vsel %vm210, %v206, 0
        %v221 = vsel %vm210, %v207, 0
        %v224 = vsel %vm210, %v208, 0
        %v227 = vsel %vm210, %v209, 0
        %229 = vmatprep.subr.mxu0 %v201
        %230 = vmatpush1.msra.mxu0 %v200
        %231 = vmatprep.subr.mxu0 %v203
        %232 = vmatpush1.msra.mxu0 %v202
        %233 = vmatprep.subr.mxu0 0.0
        %234 = vmatpush1.msra.mxu0 0.0
        %235 = vmatprep.subr.mxu0 0.0
        %236 = vmatpush1.msra.mxu0 0.0
        %237 = vmatprep.subr.mxu0 0.0
        %238 = vmatpush1.msra.mxu0 0.0
        %239 = vmatprep.subr.mxu0 0.0
        %240 = vmatpush1.msra.mxu0 0.0
        %241 = vmatprep.subr.mxu0 0.0
        %242 = vmatpush1.msra.mxu0 0.0
        %243 = vmatprep.subr.mxu0 0.0
        %244 = vmatpush1.msra.mxu0 0.0
        %245 = vmatprep.subr.mxu0 0.0
        %246 = vmatpush1.msra.mxu0 0.0
        %247 = vmatprep.subr.mxu0 0.0
        %248 = vmatpush1.msra.mxu0 0.0
        %249 = vmatprep.subr.mxu0 0.0
        %250 = vmatpush1.msra.mxu0 0.0
        %251 = vmatprep.subr.mxu0 0.0
        %252 = vmatpush1.msra.mxu0 0.0
        %253 = vmatprep.subr.mxu0 0.0
        %254 = vmatpush1.msra.mxu0 0.0
        %255 = vmatprep.subr.mxu0 0.0
        %256 = vmatpush1.msra.mxu0 0.0
        %257 = vmatprep.subr.mxu0 0.0
        %258 = vmatpush1.msra.mxu0 0.0
        %259 = vmatprep.subr.mxu0 0.0
        %260 = vmatpush1.msra.mxu0 0.0
        %261 = vmatprep.subr.mxu0 0.0
        %262 = vmatpush1.msra.mxu0 0.0
        %263 = vmatprep.subr.mxu0 0.0
        %264 = vmatpush1.msra.mxu0 0.0
        %265 = vmatprep.subr.mxu0 0.0
        %266 = vmatpush1.msra.mxu0 0.0
        %267 = vmatprep.subr.mxu0 0.0
        %268 = vmatpush1.msra.mxu0 0.0
        %269 = vmatprep.subr.mxu0 0.0
        %270 = vmatpush1.msra.mxu0 0.0
        %271 = vmatprep.subr.mxu0 0.0
        %272 = vmatpush1.msra.mxu0 0.0
        %273 = vmatprep.subr.mxu0 0.0
        %274 = vmatpush1.msra.mxu0 0.0
        %275 = vmatprep.subr.mxu0 0.0
        %276 = vmatpush1.msra.mxu0 0.0
        %277 = vmatprep.subr.mxu0 0.0
        %278 = vmatpush1.msra.mxu0 0.0
        %279 = vmatprep.subr.mxu0 0.0
        %280 = vmatpush1.msra.mxu0 0.0
        %281 = vmatprep.subr.mxu0 0.0
        %282 = vmatpush1.msra.mxu0 0.0
        %283 = vmatprep.subr.mxu0 0.0
        %284 = vmatpush1.msra.mxu0 0.0
        %285 = vmatprep.subr.mxu0 0.0
        %286 = vmatpush1.msra.mxu0 0.0
        %287 = vmatprep.subr.mxu0 0.0
        %288 = vmatpush1.msra.mxu0 0.0
        %289 = vmatprep.subr.mxu0 0.0
        %290 = vmatpush1.msra.mxu0 0.0
        %291 = vmatprep.subr.mxu0 0.0
        %292 = vmatpush1.msra.mxu0 0.0
        %293 = vmatprep.mubr.f32.mxu0 0.0
        %294 = vmatmul.mubr.f32.gmra.mrb[0].mxu0 %v212
        %v295 = vpop.f32.mrb[0].mxu0
        %v296 = vadd.f32 0.0, %v295
        %v297 = vpop.f32.mrb[0].mxu0
        %v298 = vadd.f32 0.0, %v297
        %299 = vmatprep.mubr.f32.mxu0 0.0
        %300 = vmatmul.mubr.f32.gmra.mrb[0].mxu0 %v215
        %v301 = vpop.f32.mrb[0].mxu0
        %v302 = vadd.f32 0.0, %v301
        %v303 = vpop.f32.mrb[0].mxu0
        %v304 = vadd.f32 0.0, %v303
        %305 = vmatprep.mubr.f32.mxu0 0.0
        %306 = vmatmul.mubr.f32.gmra.mrb[0].mxu0 %v218
        %v307 = vpop.f32.mrb[0].mxu0
        %v308 = vadd.f32 0.0, %v307
        %v309 = vpop.f32.mrb[0].mxu0
        %v310 = vadd.f32 0.0, %v309
        %311 = vmatprep.mubr.f32.mxu0 0.0
        %312 = vmatmul.mubr.f32.gmra.mrb[0].mxu0 %v221
        %v313 = vpop.f32.mrb[0].mxu0
        %v314 = vadd.f32 0.0, %v313
        %v315 = vpop.f32.mrb[0].mxu0
        %v316 = vadd.f32 0.0, %v315
        %317 = vmatprep.mubr.f32.mxu0 0.0
        %318 = vmatmul.mubr.f32.gmra.mrb[0].mxu0 %v224
        %v319 = vpop.f32.mrb[0].mxu0
        %v320 = vadd.f32 0.0, %v319
        %v321 = vpop.f32.mrb[0].mxu0
        %v322 = vadd.f32 0.0, %v321
        %323 = vmatprep.mubr.f32.mxu0 0.0
        %324 = vmatmul.mubr.f32.gmra.mrb[0].mxu0 %v227
        %v325 = vpop.f32.mrb[0].mxu0
        %v326 = vadd.f32 0.0, %v325
        %v327 = vpop.f32.mrb[0].mxu0
        %v328 = vadd.f32 0.0, %v327
        %329 = vdwg.mxu0
        %v330 = vmax.f32 %v296, 0.0
        %v331 = vmax.f32 %v298, 0.0
        %v332 = vld [vmem:[%s2] sm:$0xff]
        %v333 = vld [vmem:[%s2 + $0x8] sm:$0xff]
        %vm334 = vcmask 64512
        %v336 = vsel %vm334, %v332, 0
        %v339 = vsel %vm334, %v333, 0
        %341 = vmatprep.subr.mxu0 %v331
        %342 = vmatpush1.msra.mxu0 %v330
        %343 = vmatprep.subr.mxu0 0.0
        %344 = vmatpush1.msra.mxu0 0.0
        %345 = vmatprep.subr.mxu0 0.0
        %346 = vmatpush1.msra.mxu0 0.0
        %347 = vmatprep.subr.mxu0 0.0
        %348 = vmatpush1.msra.mxu0 0.0
        %349 = vmatprep.subr.mxu0 0.0
        %350 = vmatpush1.msra.mxu0 0.0
        %351 = vmatprep.subr.mxu0 0.0
        %352 = vmatpush1.msra.mxu0 0.0
        %353 = vmatprep.subr.mxu0 0.0
        %354 = vmatpush1.msra.mxu0 0.0
        %355 = vmatprep.subr.mxu0 0.0
        %356 = vmatpush1.msra.mxu0 0.0
        %357 = vmatprep.subr.mxu0 0.0
        %358 = vmatpush1.msra.mxu0 0.0
        %359 = vmatprep.subr.mxu0 0.0
        %360 = vmatpush1.msra.mxu0 0.0
        %361 = vmatprep.subr.mxu0 0.0
        %362 = vmatpush1.msra.mxu0 0.0
        %363 = vmatprep.subr.mxu0 0.0
        %364 = vmatpush1.msra.mxu0 0.0
        %365 = vmatprep.subr.mxu0 0.0
        %366 = vmatpush1.msra.mxu0 0.0
        %367 = vmatprep.subr.mxu0 0.0
        %368 = vmatpush1.msra.mxu0 0.0
        %369 = vmatprep.subr.mxu0 0.0
        %370 = vmatpush1.msra.mxu0 0.0
        %371 = vmatprep.subr.mxu0 0.0
        %372 = vmatpush1.msra.mxu0 0.0
        %373 = vmatprep.subr.mxu0 0.0
        %374 = vmatpush1.msra.mxu0 0.0
        %375 = vmatprep.subr.mxu0 0.0
        %376 = vmatpush1.msra.mxu0 0.0
        %377 = vmatprep.subr.mxu0 0.0
        %378 = vmatpush1.msra.mxu0 0.0
        %379 = vmatprep.subr.mxu0 0.0
        %380 = vmatpush1.msra.mxu0 0.0
        %381 = vmatprep.subr.mxu0 0.0
        %382 = vmatpush1.msra.mxu0 0.0
        %383 = vmatprep.subr.mxu0 0.0
        %384 = vmatpush1.msra.mxu0 0.0
        %385 = vmatprep.subr.mxu0 0.0
        %386 = vmatpush1.msra.mxu0 0.0
        %387 = vmatprep.subr.mxu0 0.0
        %388 = vmatpush1.msra.mxu0 0.0
        %389 = vmatprep.subr.mxu0 0.0
        %390 = vmatpush1.msra.mxu0 0.0
        %391 = vmatprep.subr.mxu0 0.0
        %392 = vmatpush1.msra.mxu0 0.0
        %393 = vmatprep.subr.mxu0 0.0
        %394 = vmatpush1.msra.mxu0 0.0
        %395 = vmatprep.subr.mxu0 0.0
        %396 = vmatpush1.msra.mxu0 0.0
        %397 = vmatprep.subr.mxu0 0.0
        %398 = vmatpush1.msra.mxu0 0.0
        %399 = vmatprep.subr.mxu0 0.0
        %400 = vmatpush1.msra.mxu0 0.0
        %401 = vmatprep.subr.mxu0 0.0
        %402 = vmatpush1.msra.mxu0 0.0
        %403 = vmatprep.subr.mxu0 0.0
        %404 = vmatpush1.msra.mxu0 0.0
        %405 = vmatprep.mubr.f32.mxu0 0.0
        %406 = vmatmul.mubr.f32.gmra.mrb[0].mxu0 %v336
        %v407 = vpop.f32.mrb[0].mxu0
        %v408 = vadd.f32 0.0, %v407
        %v409 = vpop.f32.mrb[0].mxu0
        %v410 = vadd.f32 0.0, %v409
        %411 = vmatprep.mubr.f32.mxu0 0.0
        %412 = vmatmul.mubr.f32.gmra.mrb[0].mxu0 %v339
        %v413 = vpop.f32.mrb[0].mxu0
        %v414 = vadd.f32 0.0, %v413
        %v415 = vpop.f32.mrb[0].mxu0
        %v416 = vadd.f32 0.0, %v415
        %417 = vdwg.mxu0
        %v418 = vmul.f32 %v408, 0.5
        %v419 = vmul.f32 %v410, 0.5
        %v420 = vmul.f32 %v414, 0.5
        %v421 = vmul.f32 %v416, 0.5
        %v422 = vtanh.pop %v418
        %v423 = vtanh.pop %v419
        %v424 = vtanh.pop %v420
        %v425 = vtanh.pop %v421
        %v426 = vmul.f32 %v302, %v308
        %v427 = vmul.f32 %v304, %v310
        %v428 = vmax.f32 %v426, 0.0
        %v429 = vmax.f32 %v427, 0.0
        %s430 = scalar_lea.vmem %s2, 16
        %v431 = vld [vmem:[%s430] sm:$0xff]
        %v432 = vld [vmem:[%s430 + $0x8] sm:$0xff]
        %v434 = vsel %vm334, %v431, 0
        %v437 = vsel %vm334, %v432, 0
        %439 = vmatprep.subr.mxu0 %v429
        %440 = vmatpush1.msra.mxu0 %v428
        %441 = vmatprep.subr.mxu0 0.0
        %442 = vmatpush1.msra.mxu0 0.0
        %443 = vmatprep.subr.mxu0 0.0
        %444 = vmatpush1.msra.mxu0 0.0
        %445 = vmatprep.subr.mxu0 0.0
        %446 = vmatpush1.msra.mxu0 0.0
        %447 = vmatprep.subr.mxu0 0.0
        %448 = vmatpush1.msra.mxu0 0.0
        %449 = vmatprep.subr.mxu0 0.0
        %450 = vmatpush1.msra.mxu0 0.0
        %451 = vmatprep.subr.mxu0 0.0
        %452 = vmatpush1.msra.mxu0 0.0
        %453 = vmatprep.subr.mxu0 0.0
        %454 = vmatpush1.msra.mxu0 0.0
        %455 = vmatprep.subr.mxu0 0.0
        %456 = vmatpush1.msra.mxu0 0.0
        %457 = vmatprep.subr.mxu0 0.0
        %458 = vmatpush1.msra.mxu0 0.0
        %459 = vmatprep.subr.mxu0 0.0
        %460 = vmatpush1.msra.mxu0 0.0
        %461 = vmatprep.subr.mxu0 0.0
        %462 = vmatpush1.msra.mxu0 0.0
        %463 = vmatprep.subr.mxu0 0.0
        %464 = vmatpush1.msra.mxu0 0.0
        %465 = vmatprep.subr.mxu0 0.0
        %466 = vmatpush1.msra.mxu0 0.0
        %467 = vmatprep.subr.mxu0 0.0
        %468 = vmatpush1.msra.mxu0 0.0
        %469 = vmatprep.subr.mxu0 0.0
        %470 = vmatpush1.msra.mxu0 0.0
        %471 = vmatprep.subr.mxu0 0.0
        %472 = vmatpush1.msra.mxu0 0.0
        %473 = vmatprep.subr.mxu0 0.0
        %474 = vmatpush1.msra.mxu0 0.0
        %475 = vmatprep.subr.mxu0 0.0
        %476 = vmatpush1.msra.mxu0 0.0
        %477 = vmatprep.subr.mxu0 0.0
        %478 = vmatpush1.msra.mxu0 0.0
        %479 = vmatprep.subr.mxu0 0.0
        %480 = vmatpush1.msra.mxu0 0.0
        %481 = vmatprep.subr.mxu0 0.0
        %482 = vmatpush1.msra.mxu0 0.0
        %483 = vmatprep.subr.mxu0 0.0
        %484 = vmatpush1.msra.mxu0 0.0
        %485 = vmatprep.subr.mxu0 0.0
        %486 = vmatpush1.msra.mxu0 0.0
        %487 = vmatprep.subr.mxu0 0.0
        %488 = vmatpush1.msra.mxu0 0.0
        %489 = vmatprep.subr.mxu0 0.0
        %490 = vmatpush1.msra.mxu0 0.0
        %491 = vmatprep.subr.mxu0 0.0
        %492 = vmatpush1.msra.mxu0 0.0
        %493 = vmatprep.subr.mxu0 0.0
        %494 = vmatpush1.msra.mxu0 0.0
        %495 = vmatprep.subr.mxu0 0.0
        %496 = vmatpush1.msra.mxu0 0.0
        %497 = vmatprep.subr.mxu0 0.0
        %498 = vmatpush1.msra.mxu0 0.0
        %499 = vmatprep.subr.mxu0 0.0
        %500 = vmatpush1.msra.mxu0 0.0
        %501 = vmatprep.subr.mxu0 0.0
        %502 = vmatpush1.msra.mxu0 0.0
        %503 = vmatprep.mubr.f32.mxu0 0.0
        %504 = vmatmul.mubr.f32.gmra.mrb[0].mxu0 %v434
        %v505 = vpop.f32.mrb[0].mxu0
        %v506 = vadd.f32 0.0, %v505
        %v507 = vpop.f32.mrb[0].mxu0
        %v508 = vadd.f32 0.0, %v507
        %509 = vmatprep.mubr.f32.mxu0 0.0
        %510 = vmatmul.mubr.f32.gmra.mrb[0].mxu0 %v437
        %v511 = vpop.f32.mrb[0].mxu0
        %v512 = vadd.f32 0.0, %v511
        %v513 = vpop.f32.mrb[0].mxu0
        %v514 = vadd.f32 0.0, %v513
        %515 = vdwg.mxu0
        %v516 = vmul.f32 %v506, 0.5
        %v517 = vmul.f32 %v508, 0.5
        %v518 = vmul.f32 %v512, 0.5
        %v519 = vmul.f32 %v514, 0.5
        %v520 = vtanh.pop %v516
        %v521 = vtanh.pop %v517
        %v522 = vtanh.pop %v518
        %v523 = vtanh.pop %v519
        %v524 = vadd.f32 %v422, %v520
        %v525 = vadd.f32 %v423, %v521
        %v526 = vadd.f32 %v424, %v522
        %v527 = vadd.f32 %v425, %v523
        %v528 = vmul.f32 %v314, %v320
        %v529 = vmul.f32 %v316, %v322
        %v530 = vmul.f32 %v528, %v326
        %v531 = vmul.f32 %v529, %v328
        %v532 = vmax.f32 %v530, 0.0
        %v533 = vmax.f32 %v531, 0.0
        %s534 = scalar_lea.vmem %s2, 32
        %v535 = vld [vmem:[%s534] sm:$0xff]
        %v536 = vld [vmem:[%s534 + $0x8] sm:$0xff]
        %v538 = vsel %vm334, %v535, 0
        %v541 = vsel %vm334, %v536, 0
        %543 = vmatprep.subr.mxu0 %v533
        %544 = vmatpush1.msra.mxu0 %v532
        %545 = vmatprep.subr.mxu0 0.0
        %546 = vmatpush1.msra.mxu0 0.0
        %547 = vmatprep.subr.mxu0 0.0
        %548 = vmatpush1.msra.mxu0 0.0
        %549 = vmatprep.subr.mxu0 0.0
        %550 = vmatpush1.msra.mxu0 0.0
        %551 = vmatprep.subr.mxu0 0.0
        %552 = vmatpush1.msra.mxu0 0.0
        %553 = vmatprep.subr.mxu0 0.0
        %554 = vmatpush1.msra.mxu0 0.0
        %555 = vmatprep.subr.mxu0 0.0
        %556 = vmatpush1.msra.mxu0 0.0
        %557 = vmatprep.subr.mxu0 0.0
        %558 = vmatpush1.msra.mxu0 0.0
        %559 = vmatprep.subr.mxu0 0.0
        %560 = vmatpush1.msra.mxu0 0.0
        %561 = vmatprep.subr.mxu0 0.0
        %562 = vmatpush1.msra.mxu0 0.0
        %563 = vmatprep.subr.mxu0 0.0
        %564 = vmatpush1.msra.mxu0 0.0
        %565 = vmatprep.subr.mxu0 0.0
        %566 = vmatpush1.msra.mxu0 0.0
        %567 = vmatprep.subr.mxu0 0.0
        %568 = vmatpush1.msra.mxu0 0.0
        %569 = vmatprep.subr.mxu0 0.0
        %570 = vmatpush1.msra.mxu0 0.0
        %571 = vmatprep.subr.mxu0 0.0
        %572 = vmatpush1.msra.mxu0 0.0
        %573 = vmatprep.subr.mxu0 0.0
        %574 = vmatpush1.msra.mxu0 0.0
        %575 = vmatprep.subr.mxu0 0.0
        %576 = vmatpush1.msra.mxu0 0.0
        %577 = vmatprep.subr.mxu0 0.0
        %578 = vmatpush1.msra.mxu0 0.0
        %579 = vmatprep.subr.mxu0 0.0
        %580 = vmatpush1.msra.mxu0 0.0
        %581 = vmatprep.subr.mxu0 0.0
        %582 = vmatpush1.msra.mxu0 0.0
        %583 = vmatprep.subr.mxu0 0.0
        %584 = vmatpush1.msra.mxu0 0.0
        %585 = vmatprep.subr.mxu0 0.0
        %586 = vmatpush1.msra.mxu0 0.0
        %587 = vmatprep.subr.mxu0 0.0
        %588 = vmatpush1.msra.mxu0 0.0
        %589 = vmatprep.subr.mxu0 0.0
        %590 = vmatpush1.msra.mxu0 0.0
        %591 = vmatprep.subr.mxu0 0.0
        %592 = vmatpush1.msra.mxu0 0.0
        %593 = vmatprep.subr.mxu0 0.0
        %594 = vmatpush1.msra.mxu0 0.0
        %595 = vmatprep.subr.mxu0 0.0
        %596 = vmatpush1.msra.mxu0 0.0
        %597 = vmatprep.subr.mxu0 0.0
        %598 = vmatpush1.msra.mxu0 0.0
        %599 = vmatprep.subr.mxu0 0.0
        %600 = vmatpush1.msra.mxu0 0.0
        %601 = vmatprep.subr.mxu0 0.0
        %602 = vmatpush1.msra.mxu0 0.0
        %603 = vmatprep.subr.mxu0 0.0
        %604 = vmatpush1.msra.mxu0 0.0
        %605 = vmatprep.subr.mxu0 0.0
        %606 = vmatpush1.msra.mxu0 0.0
        %607 = vmatprep.mubr.f32.mxu0 0.0
        %608 = vmatmul.mubr.f32.gmra.mrb[0].mxu0 %v538
        %v609 = vpop.f32.mrb[0].mxu0
        %v610 = vadd.f32 0.0, %v609
        %v611 = vpop.f32.mrb[0].mxu0
        %v612 = vadd.f32 0.0, %v611
        %613 = vmatprep.mubr.f32.mxu0 0.0
        %614 = vmatmul.mubr.f32.gmra.mrb[0].mxu0 %v541
        %v615 = vpop.f32.mrb[0].mxu0
        %v616 = vadd.f32 0.0, %v615
        %v617 = vpop.f32.mrb[0].mxu0
        %v618 = vadd.f32 0.0, %v617
        %619 = vdwg.mxu0
        %v620 = vmul.f32 %v610, 0.5
        %v621 = vmul.f32 %v612, 0.5
        %v622 = vmul.f32 %v616, 0.5
        %v623 = vmul.f32 %v618, 0.5
        %v624 = vtanh.pop %v620
        %v625 = vtanh.pop %v621
        %v626 = vtanh.pop %v622
        %v627 = vtanh.pop %v623
        %v628 = vadd.f32 %v524, %v624
        %v629 = vadd.f32 %v525, %v625
        %v630 = vadd.f32 %v526, %v626
        %v631 = vadd.f32 %v527, %v627
        %v632 = vmul.f32 %v628, 0.16666667
        %v633 = vmul.f32 %v629, 0.16666667
        %v634 = vmul.f32 %v630, 0.16666667
        %v635 = vmul.f32 %v631, 0.16666667
        %v636 = vadd.f32 %v632, 0.5
        %v637 = vadd.f32 %v633, 0.5
        %v638 = vadd.f32 %v634, 0.5
        %v639 = vadd.f32 %v635, 0.5
        %v640 = vmul.f32 %v200, %v636
        %v641 = vmul.f32 %v201, %v637
        %v642 = vmul.f32 %v202, %v638
        %v643 = vmul.f32 %v203, %v639
        %644 = vst [vmem:[%s188] sm:$0xff] %v640
        %645 = vst [vmem:[%s188 + $0x8] sm:$0xff] %v641
        %646 = vst [vmem:[%s188 + $0x10] sm:$0xff] %v642
        %647 = vst [vmem:[%s188 + $0x18] sm:$0xff] %v643
        %s648 = sand.u32 %s109, 1
        %s649 = scalar_lea.sflag [#allocation3], %s648
        %s650 = sand.u32 %s109, 1
        %s651 = smul.addr %s650, 32
        %s652 = scalar_lea.vmem [#allocation2], %s651
        // Predicated region
        $region33: #{tpu_custom_call.1} parent=31 // pred_check
          %p653 = pneg %p119
        $region34: #{tpu_custom_call.1} parent=31 // pred_check_branch
          %655 = sbr.rel (%p653) target = $region36
        $region35: #{tpu_custom_call.1} parent=31 // pred_region
          %s656 = smul.u32 2, %s22
          %s658 = ssub.s32 512, 512
          %659 = vsyncadd %s649, %s658
          %s660 = smul.addr %s21, 4
          %s661 = sadd.s32 %s656, %s660
          %s662 = smul.addr %s661, 128
          %s663 = scalar_lea.hbm %s3, %s662
          %s664 = sshll.u32 %s652, 4
          %s665 = int_to_ptr.vmem [resolvable:$true] %s664
          %670 = dma.vmem_to_hbm [thread:$0]  %s665, 512, %s663, %s649, 256, 256, 16
        $region36: #{tpu_custom_call.1} parent=31 // pred_fallthru
          _
      $region32: #{tpu_custom_call.1} parent=5 // pred_fallthru
        _
      %p671 = scmp.le.s32.totalorder 2, %s12
      // Predicated region
      $region37: #{tpu_custom_call.1} parent=5 // pred_check
        %p672 = pneg %p671
      $region38: #{tpu_custom_call.1} parent=5 // pred_check_branch
        %674 = sbr.rel (%p672) target = $region40
      $region39: #{tpu_custom_call.1} parent=5 // pred_region
        %s675 = ssub.s32 %s12, 2
        // Predicated region
        $region41: #{tpu_custom_call.1} parent=39 // pred_check
          %p676 = pneg %p125
        $region42: #{tpu_custom_call.1} parent=39 // pred_check_branch
          %678 = sbr.rel (%p676) target = $region44
        $region43: #{tpu_custom_call.1} parent=39 // pred_region
          %s679 = sand.u32 %s110, 1
          %s680 = scalar_lea.sflag [#allocation3], %s679
          %s681 = sand.u32 %s110, 1
          %s682 = smul.addr %s681, 32
          %s683 = scalar_lea.vmem [#allocation2], %s682
          %684 = dma.done %s680, 512
        $region44: #{tpu_custom_call.1} parent=39 // pred_fallthru
          _
      $region40: #{tpu_custom_call.1} parent=5 // pred_fallthru
        _
    $region6: #{tpu_custom_call.1} parent=1 // loop_footer
      %s16 = sadd.s32 1, %s12
    $region7: #{tpu_custom_call.1} parent=1 // loop_footer_branch
      %11 = sbr.rel target = $region3
    $region8: #{tpu_custom_call.1} parent=1 // loop_exit
      _
    %685 = vsyncpa [#allocation3], 1
    %s686 = scalar_lea.sflag [#allocation3], 1
    %687 = vsyncpa %s686, 1

</llo_original>
